<compile_context>
chip_gen: v6e
topology: v6e:2x2x1
jax: 0.10.0
libtpu: 0.0.40
codegen_flags: <defaults>
</compile_context>

<pallas_src>
import jax
import jax.numpy as jnp
from jax.experimental import pallas as pl
from jax.experimental.pallas import tpu as pltpu


def _round_up(x, m):
    return ((x + m - 1) // m) * m


def _rdae_kernel(x_ref,
                 w1_ref, b1_ref, w2_ref, b2_ref,
                 w3_ref, b3_ref, w4_ref, b4_ref,
                 enc_ref, dec_ref):
    """One batch tile: 4 MXU matmuls, f32 accumulation, fused bias-add + ReLU."""
    wd = w1_ref.dtype          # MXU input dtype (f32 or bf16)
    x = x_ref[...]

    # --- encoder: Linear(n, n/2) -> ReLU -> Linear(n/2, n/4) ---
    h1 = jnp.dot(x, w1_ref[...], preferred_element_type=jnp.float32) + b1_ref[...]
    h1 = jnp.maximum(h1, 0.0).astype(wd)
    enc = jnp.dot(h1, w2_ref[...], preferred_element_type=jnp.float32) + b2_ref[...]

    # --- decoder: Linear(n/4, n/2) -> ReLU -> Linear(n/2, n) ---
    h2 = jnp.dot(enc.astype(wd), w3_ref[...], preferred_element_type=jnp.float32) + b3_ref[...]
    h2 = jnp.maximum(h2, 0.0).astype(wd)
    dec = jnp.dot(h2, w4_ref[...], preferred_element_type=jnp.float32) + b4_ref[...]

    enc_ref[...] = enc.astype(enc_ref.dtype)
    dec_ref[...] = dec.astype(dec_ref.dtype)


def rdae_forward(x, params, *, tile_b=None, compute_dtype=jnp.float32):
    """x: [B, n]. params: dict of weights ([in,out]) / biases ([1,out]).

    Returns (encoded [B, n/4], decoded [B, n]) in float32.
    """
    B, n = x.shape
    n2 = params["w1"].shape[1]
    n4 = params["w2"].shape[1]
    cd = jnp.dtype(compute_dtype)

    # Batch tile: multiple of 16 (covers f32/bf16 sublane tiling), capped at 256
    # to roughly saturate the 256-wide MXU M dimension on v6e/v7x.
    if tile_b is None:
        tile_b = min(256, _round_up(B, 16))
    tile_b = max(16, _round_up(tile_b, 16))

    Bp = _round_up(B, tile_b)               # pad batch to a whole number of tiles
    xk = x.astype(cd)
    if Bp != B:
        xk = jnp.pad(xk, ((0, Bp - B), (0, 0)))

    # Weights in the MXU-input dtype; biases stay f32 (added to the f32 accumulator).
    w1 = params["w1"].astype(cd); w2 = params["w2"].astype(cd)
    w3 = params["w3"].astype(cd); w4 = params["w4"].astype(cd)
    b1 = params["b1"].astype(jnp.float32); b2 = params["b2"].astype(jnp.float32)
    b3 = params["b3"].astype(jnp.float32); b4 = params["b4"].astype(jnp.float32)

    grid = (Bp // tile_b,)

    batch_spec = lambda cols: pl.BlockSpec((tile_b, cols), lambda i: (i, 0))
    const_spec = lambda a: pl.BlockSpec(a.shape, lambda i: (0, 0))   # resident

    in_specs = [batch_spec(n),
                const_spec(w1), const_spec(b1), const_spec(w2), const_spec(b2),
                const_spec(w3), const_spec(b3), const_spec(w4), const_spec(b4)]
    out_specs = (batch_spec(n4), batch_spec(n))
    out_shape = (jax.ShapeDtypeStruct((Bp, n4), jnp.float32),
                 jax.ShapeDtypeStruct((Bp, n), jnp.float32))

    # --- VMEM budget: resident weights + double-buffered batch tiles + live acts.
    wb = sum(int(a.size) * a.dtype.itemsize for a in (w1, w2, w3, w4))
    bb = sum(8 * _round_up(a.shape[1], 128) * 4 for a in (b1, b2, b3, b4))
    io = 2 * (tile_b * n * cd.itemsize            # x tile (double buffered)
              + tile_b * n4 * 4 + tile_b * n * 4)  # enc/dec tiles (double buffered)
    live = tile_b * (2 * n2 + n + n4) * 4          # h1/h2/enc/dec accumulators
    vmem_limit = int(min(128 * 1024 * 1024,
                         max(16 * 1024 * 1024, 2 * (wb + bb + io + live))))

    flops = 4 * Bp * (n * n2 + n2 * n4)            # 2 flops/MAC, encoder + decoder
    bytes_accessed = (int(xk.size) * cd.itemsize + wb
                      + sum(int(a.size) * 4 for a in (b1, b2, b3, b4))
                      + Bp * n4 * 4 + Bp * n * 4)

    enc, dec = pl.pallas_call(
        _rdae_kernel,
        grid=grid,
        in_specs=in_specs,
        out_specs=out_specs,
        out_shape=out_shape,
        compiler_params=pltpu.CompilerParams(
            dimension_semantics=("parallel",),     # megacore sharding on v7x
            vmem_limit_bytes=vmem_limit),
        cost_estimate=pl.CostEstimate(flops=flops, transcendentals=0,
                                      bytes_accessed=bytes_accessed),
    )(xk, w1, b1, w2, b2, w3, b3, w4, b4)

    if Bp != B:
        enc = enc[:B]
        dec = dec[:B]
    return enc, dec


def init_rdae_params(key, n):
    """Deterministic init mimicking PyTorch nn.Linear default U[-1/sqrt(fan_in), +1/sqrt(fan_in)]."""
    n2 = int(n * 0.5)
    n4 = int(n * 0.25)

    def linear(key, fan_in, fan_out):
        kw, kb = jax.random.split(key)
        bound = 1.0 / jnp.sqrt(float(fan_in))
        w = jax.random.uniform(kw, (fan_in, fan_out), jnp.float32, -bound, bound)
        b = jax.random.uniform(kb, (1, fan_out), jnp.float32, -bound, bound)
        return w, b

    k1, k2, k3, k4 = jax.random.split(key, 4)
    w1, b1 = linear(k1, n, n2)
    w2, b2 = linear(k2, n2, n4)
    w3, b3 = linear(k3, n4, n2)
    w4, b4 = linear(k4, n2, n)
    return dict(w1=w1, b1=b1, w2=w2, b2=b2, w3=w3, b3=b3, w4=w4, b4=b4)


def rdae_reference(x, p, compute_dtype=jnp.float32):
    """Plain-JAX reference mirroring the kernel's cast points."""
    cd = jnp.dtype(compute_dtype)

    def lin(a, w, b):
        return (jnp.dot(a.astype(cd), w.astype(cd),
                        preferred_element_type=jnp.float32)
                + b.astype(jnp.float32))

    h1 = jnp.maximum(lin(x, p["w1"], p["b1"]), 0.0)
    enc = lin(h1, p["w2"], p["b2"])
    h2 = jnp.maximum(lin(enc, p["w3"], p["b3"]), 0.0)
    dec = lin(h2, p["w4"], p["b4"])
    return enc, dec


if __name__ == "__main__":
    key = jax.random.PRNGKey(0)
    k_x, k_p = jax.random.split(key)

    # small demo shapes: n divisible by 4; B deliberately NOT a multiple of the
    # batch tile to exercise the padding + multi-tile grid path.
    B, n = 40, 256
    x = jax.random.normal(k_x, (B, n), jnp.float32)
    params = init_rdae_params(k_p, n)

    # f32 compute path (grid=(3,) with tile_b=16)
    enc, dec = rdae_forward(x, params, tile_b=16, compute_dtype=jnp.float32)
    jax.block_until_ready((enc, dec))
    enc_ref, dec_ref = rdae_reference(x, params, jnp.float32)
    assert enc.shape == (B, n // 4) and dec.shape == (B, n)
    assert jnp.allclose(enc, enc_ref, atol=1e-4, rtol=1e-4)
    assert jnp.allclose(dec, dec_ref, atol=1e-4, rtol=1e-4)

    # bf16 compute path (native MXU input dtype), f32 accumulation
    enc16, dec16 = rdae_forward(x, params, tile_b=32, compute_dtype=jnp.bfloat16)
    jax.block_until_ready((enc16, dec16))
    enc_ref16, dec_ref16 = rdae_reference(x, params, jnp.bfloat16)
    assert jnp.allclose(enc16, enc_ref16, atol=2e-2, rtol=2e-2)
    assert jnp.allclose(dec16, dec_ref16, atol=2e-2, rtol=2e-2)

    print("KERNEL_OK")
</pallas_src>

<mosaic_0001>
module attributes {stable_mosaic.version = 11 : i64} {
  func.func @_rdae_kernel(%arg0: i32, %arg1: memref<16x256xf32, #tpu.memory_space<vmem>>, %arg2: memref<256x128xf32, #tpu.memory_space<vmem>>, %arg3: memref<1x128xf32, #tpu.memory_space<vmem>>, %arg4: memref<128x64xf32, #tpu.memory_space<vmem>>, %arg5: memref<1x64xf32, #tpu.memory_space<vmem>>, %arg6: memref<64x128xf32, #tpu.memory_space<vmem>>, %arg7: memref<1x128xf32, #tpu.memory_space<vmem>>, %arg8: memref<128x256xf32, #tpu.memory_space<vmem>>, %arg9: memref<1x256xf32, #tpu.memory_space<vmem>>, %arg10: memref<16x64xf32, #tpu.memory_space<vmem>>, %arg11: memref<16x256xf32, #tpu.memory_space<vmem>>) attributes {dimension_semantics = [#tpu.dimension_semantics<parallel>], iteration_bounds = array<i64: 3>, scalar_prefetch = 0 : i64, scratch_operands = 0 : i64, tpu.core_type = #tpu.core_type<tc>, window_params = [{transform_indices = @transform_0, window_bounds = array<i64: 16, 256>}, {pipeline_mode = #tpu.pipeline_mode<synchronous>, transform_indices = @transform_1, window_bounds = array<i64: 256, 128>}, {pipeline_mode = #tpu.pipeline_mode<synchronous>, transform_indices = @transform_2, window_bounds = array<i64: 1, 128>}, {pipeline_mode = #tpu.pipeline_mode<synchronous>, transform_indices = @transform_3, window_bounds = array<i64: 128, 64>}, {pipeline_mode = #tpu.pipeline_mode<synchronous>, transform_indices = @transform_4, window_bounds = array<i64: 1, 64>}, {pipeline_mode = #tpu.pipeline_mode<synchronous>, transform_indices = @transform_5, window_bounds = array<i64: 64, 128>}, {pipeline_mode = #tpu.pipeline_mode<synchronous>, transform_indices = @transform_6, window_bounds = array<i64: 1, 128>}, {pipeline_mode = #tpu.pipeline_mode<synchronous>, transform_indices = @transform_7, window_bounds = array<i64: 128, 256>}, {pipeline_mode = #tpu.pipeline_mode<synchronous>, transform_indices = @transform_8, window_bounds = array<i64: 1, 256>}, {transform_indices = @transform_9, window_bounds = array<i64: 16, 64>}, {transform_indices = @transform_10, window_bounds = array<i64: 16, 256>}]} {
    %c0 = arith.constant 0 : index
    %c0_0 = arith.constant 0 : index
    %0 = vector.load %arg1[%c0, %c0_0] : memref<16x256xf32, #tpu.memory_space<vmem>>, vector<16x256xf32>
    %c0_1 = arith.constant 0 : index
    %c0_2 = arith.constant 0 : index
    %1 = vector.load %arg2[%c0_1, %c0_2] : memref<256x128xf32, #tpu.memory_space<vmem>>, vector<256x128xf32>
    %cst = arith.constant dense<0.000000e+00> : vector<16x128xf32>
    %2 = tpu.matmul %0, %1, %cst {dimension_numbers = #tpu.dot_dimension_numbers<[1], [0], [0], [1], [0, 0, 1, 1], [], []>} : vector<16x256xf32>, vector<256x128xf32>, vector<16x128xf32> -> vector<16x128xf32>
    %c0_3 = arith.constant 0 : index
    %c0_4 = arith.constant 0 : index
    %3 = vector.load %arg3[%c0_3, %c0_4] : memref<1x128xf32, #tpu.memory_space<vmem>>, vector<1x128xf32>
    %4 = vector.broadcast %3 : vector<1x128xf32> to vector<16x128xf32>
    %5 = arith.addf %2, %4 : vector<16x128xf32>
    %cst_5 = arith.constant 0.000000e+00 : f32
    %6 = vector.broadcast %cst_5 : f32 to vector<16x128xf32>
    %7 = arith.maximumf %5, %6 : vector<16x128xf32>
    %c0_6 = arith.constant 0 : index
    %c0_7 = arith.constant 0 : index
    %8 = vector.load %arg4[%c0_6, %c0_7] : memref<128x64xf32, #tpu.memory_space<vmem>>, vector<128x64xf32>
    %cst_8 = arith.constant dense<0.000000e+00> : vector<16x64xf32>
    %9 = tpu.matmul %7, %8, %cst_8 {dimension_numbers = #tpu.dot_dimension_numbers<[1], [0], [0], [1], [0, 0, 1, 1], [], []>} : vector<16x128xf32>, vector<128x64xf32>, vector<16x64xf32> -> vector<16x64xf32>
    %c0_9 = arith.constant 0 : index
    %c0_10 = arith.constant 0 : index
    %10 = vector.load %arg5[%c0_9, %c0_10] : memref<1x64xf32, #tpu.memory_space<vmem>>, vector<1x64xf32>
    %11 = vector.broadcast %10 : vector<1x64xf32> to vector<16x64xf32>
    %12 = arith.addf %9, %11 : vector<16x64xf32>
    %c0_11 = arith.constant 0 : index
    %c0_12 = arith.constant 0 : index
    %13 = vector.load %arg6[%c0_11, %c0_12] : memref<64x128xf32, #tpu.memory_space<vmem>>, vector<64x128xf32>
    %cst_13 = arith.constant dense<0.000000e+00> : vector<16x128xf32>
    %14 = tpu.matmul %12, %13, %cst_13 {dimension_numbers = #tpu.dot_dimension_numbers<[1], [0], [0], [1], [0, 0, 1, 1], [], []>} : vector<16x64xf32>, vector<64x128xf32>, vector<16x128xf32> -> vector<16x128xf32>
    %c0_14 = arith.constant 0 : index
    %c0_15 = arith.constant 0 : index
    %15 = vector.load %arg7[%c0_14, %c0_15] : memref<1x128xf32, #tpu.memory_space<vmem>>, vector<1x128xf32>
    %16 = vector.broadcast %15 : vector<1x128xf32> to vector<16x128xf32>
    %17 = arith.addf %14, %16 : vector<16x128xf32>
    %cst_16 = arith.constant 0.000000e+00 : f32
    %18 = vector.broadcast %cst_16 : f32 to vector<16x128xf32>
    %19 = arith.maximumf %17, %18 : vector<16x128xf32>
    %c0_17 = arith.constant 0 : index
    %c0_18 = arith.constant 0 : index
    %20 = vector.load %arg8[%c0_17, %c0_18] : memref<128x256xf32, #tpu.memory_space<vmem>>, vector<128x256xf32>
    %cst_19 = arith.constant dense<0.000000e+00> : vector<16x256xf32>
    %21 = tpu.matmul %19, %20, %cst_19 {dimension_numbers = #tpu.dot_dimension_numbers<[1], [0], [0], [1], [0, 0, 1, 1], [], []>} : vector<16x128xf32>, vector<128x256xf32>, vector<16x256xf32> -> vector<16x256xf32>
    %c0_20 = arith.constant 0 : index
    %c0_21 = arith.constant 0 : index
    %22 = vector.load %arg9[%c0_20, %c0_21] : memref<1x256xf32, #tpu.memory_space<vmem>>, vector<1x256xf32>
    %23 = vector.broadcast %22 : vector<1x256xf32> to vector<16x256xf32>
    %24 = arith.addf %21, %23 : vector<16x256xf32>
    %c0_22 = arith.constant 0 : index
    %c0_23 = arith.constant 0 : index
    %25 = vector.load %arg10[%c0_22, %c0_23] : memref<16x64xf32, #tpu.memory_space<vmem>>, vector<16x64xf32>
    tpu.vector_store %arg10[%c0_22, %c0_23], %12 {strides = array<i32>} : memref<16x64xf32, #tpu.memory_space<vmem>>, vector<16x64xf32>,
    %c0_24 = arith.constant 0 : index
    %c0_25 = arith.constant 0 : index
    %26 = vector.load %arg11[%c0_24, %c0_25] : memref<16x256xf32, #tpu.memory_space<vmem>>, vector<16x256xf32>
    tpu.vector_store %arg11[%c0_24, %c0_25], %24 {strides = array<i32>} : memref<16x256xf32, #tpu.memory_space<vmem>>, vector<16x256xf32>,
    return
  }
  func.func @transform_0(%arg0: i32) -> (i32, i32) {
    %c0_i32 = arith.constant 0 : i32
    %c0_i32_0 = arith.constant 0 : i32
    return %arg0, %c0_i32 : i32, i32
  }
  func.func @transform_1(%arg0: i32) -> (i32, i32) {
    %c0_i32 = arith.constant 0 : i32
    %c0_i32_0 = arith.constant 0 : i32
    %c0_i32_1 = arith.constant 0 : i32
    return %c0_i32, %c0_i32_0 : i32, i32
  }
  func.func @transform_2(%arg0: i32) -> (i32, i32) {
    %c0_i32 = arith.constant 0 : i32
    %c0_i32_0 = arith.constant 0 : i32
    %c0_i32_1 = arith.constant 0 : i32
    return %c0_i32, %c0_i32_0 : i32, i32
  }
  func.func @transform_3(%arg0: i32) -> (i32, i32) {
    %c0_i32 = arith.constant 0 : i32
    %c0_i32_0 = arith.constant 0 : i32
    %c0_i32_1 = arith.constant 0 : i32
    return %c0_i32, %c0_i32_0 : i32, i32
  }
  func.func @transform_4(%arg0: i32) -> (i32, i32) {
    %c0_i32 = arith.constant 0 : i32
    %c0_i32_0 = arith.constant 0 : i32
    %c0_i32_1 = arith.constant 0 : i32
    return %c0_i32, %c0_i32_0 : i32, i32
  }
  func.func @transform_5(%arg0: i32) -> (i32, i32) {
    %c0_i32 = arith.constant 0 : i32
    %c0_i32_0 = arith.constant 0 : i32
    %c0_i32_1 = arith.constant 0 : i32
    return %c0_i32, %c0_i32_0 : i32, i32
  }
  func.func @transform_6(%arg0: i32) -> (i32, i32) {
    %c0_i32 = arith.constant 0 : i32
    %c0_i32_0 = arith.constant 0 : i32
    %c0_i32_1 = arith.constant 0 : i32
    return %c0_i32, %c0_i32_0 : i32, i32
  }
  func.func @transform_7(%arg0: i32) -> (i32, i32) {
    %c0_i32 = arith.constant 0 : i32
    %c0_i32_0 = arith.constant 0 : i32
    %c0_i32_1 = arith.constant 0 : i32
    return %c0_i32, %c0_i32_0 : i32, i32
  }
  func.func @transform_8(%arg0: i32) -> (i32, i32) {
    %c0_i32 = arith.constant 0 : i32
    %c0_i32_0 = arith.constant 0 : i32
    %c0_i32_1 = arith.constant 0 : i32
    return %c0_i32, %c0_i32_0 : i32, i32
  }
  func.func @transform_9(%arg0: i32) -> (i32, i32) {
    %c0_i32 = arith.constant 0 : i32
    %c0_i32_0 = arith.constant 0 : i32
    return %arg0, %c0_i32 : i32, i32
  }
  func.func @transform_10(%arg0: i32) -> (i32, i32) {
    %c0_i32 = arith.constant 0 : i32
    %c0_i32_0 = arith.constant 0 : i32
    return %arg0, %c0_i32 : i32, i32
  }
}

</mosaic_0001>

<llo_original>
// kernel: tpu_custom_call.1
$region0: #{tpu_custom_call.1}
  #allocation0 [shape = 'u32[]', space=smem, size = 0x4, offset = 0x4, fixed_abs, tag = 'smem constant byte address 0x4 - core index']
  #allocation1 [shape = 'u32[144,128]{1,0:T(1,128)}', space=vmem, size = 0x12000, scoped, tag = 'internal scratch']
  %s0 = inlined_call_operand.vmem [shape: f32[48,256], index: 0, kind: input, shape index: {}]
  %s1 = inlined_call_operand.hbm [shape: f32[256,128], index: 1, kind: input, shape index: {}]
  %s2 = inlined_call_operand.vmem [shape: f32[1,128], index: 2, kind: input, shape index: {}]
  %s3 = inlined_call_operand.vmem [shape: f32[128,64], index: 3, kind: input, shape index: {}]
  %s4 = inlined_call_operand.vmem [shape: f32[1,64], index: 4, kind: input, shape index: {}]
  %s5 = inlined_call_operand.vmem [shape: f32[64,128], index: 5, kind: input, shape index: {}]
  %s6 = inlined_call_operand.vmem [shape: f32[1,128], index: 6, kind: input, shape index: {}]
  %s7 = inlined_call_operand.hbm [shape: f32[128,256], index: 7, kind: input, shape index: {}]
  %s8 = inlined_call_operand.vmem [shape: f32[1,256], index: 8, kind: input, shape index: {}]
  %s9 = inlined_call_operand.hbm [shape: f32[48,64], index: 9, kind: output, shape index: {0}]
  %s10 = inlined_call_operand.hbm [shape: f32[48,256], index: 10, kind: output, shape index: {1}]
  %11 = xla_tuple %s9, %s10
  %s12 = sld [smem:[#allocation0]]
  $region85: #{tpu_custom_call.1} parent=0
    _
  %s14 = ssub.s32 1, %s12
  %s15 = scalar_select 0, %s14, %s12
  $region1: #{tpu_custom_call.1} parent=0
    #allocation2 [shape = 'u8[131072]{0}', space=vmem, size = 0x20000, scoped, tag = 'input window, operand 1, single buffered']
    #allocation3 [shape = 's32[2]{0}', space=sflag, size = 0x8, scoped, tag = 'scoped memory for tpu_custom_call.1']
    #allocation4 [shape = 's32[2]{0}', space=sflag, size = 0x8, scoped, tag = 'scoped memory for tpu_custom_call.1']
    #allocation5 [shape = 'u8[131072]{0}', space=vmem, size = 0x20000, scoped, tag = 'input window, operand 7, single buffered']
    #allocation6 [shape = 's32[1]{0}', space=sflag, size = 0x4, scoped, tag = 'scoped memory for tpu_custom_call.1']
    #allocation7 [shape = 'u8[16384]{0}', space=vmem, size = 0x4000, scoped, tag = 'output window, operand 0']
    #allocation8 [shape = 'u8[32768]{0}', space=vmem, size = 0x8000, scoped, tag = 'output window, operand 1']
    #allocation9 [shape = 's32[2]{0}', space=sflag, size = 0x8, scoped, tag = 'scoped memory for tpu_custom_call.1']
    %16 = vsyncpa [#allocation3], 0
    %17 = vsyncpa [#allocation6], 0
    %18 = vsyncpa [#allocation4], 0
    %s19 = scalar_lea.sflag [#allocation4], 1
    %20 = vsyncpa %s19, 0
    %21 = vsyncpa [#allocation9], 0
    %s22 = scalar_lea.sflag [#allocation9], 1
    %23 = vsyncpa %s22, 0
    loop: start=0, step=1, limit=5
    $region2: #{tpu_custom_call.1} parent=1 // loop_pre_header
      _
    $region3: #{tpu_custom_call.1} parent=1 // loop_header
      %s25 = sphi 0, %s29
      %p26 = scmp.ge.s32.totalorder %s25, 5
      %s35 = sphi 0, %s37
      %s38 = sphi 0, %s35
      %s39 = sphi 0, %s38
      %s55 = sphi 0, %s39
      %s59 = sphi 0, %s59
      %s61 = sphi 0, %s59
      %s62 = sphi 0, %s61
      %s76 = sphi 0, %s62
      %s80 = sphi 0, %s80
      %s82 = sphi 0, %s80
      %s83 = sphi 0, %s82
      %s97 = sphi 0, %s83
      %s101 = sphi 0, %s101
      %s103 = sphi 0, %s101
      %s104 = sphi 0, %s103
      %s118 = sphi 0, %s104
      %s122 = sphi 0, %s122
      %s124 = sphi 0, %s122
      %s125 = sphi 0, %s124
      %s139 = sphi 0, %s125
      %s143 = sphi 0, %s143
      %s145 = sphi 0, %s143
      %s146 = sphi 0, %s145
      %s160 = sphi 0, %s146
      %s164 = sphi 0, %s164
      %s166 = sphi 0, %s164
      %s167 = sphi 0, %s166
      %s181 = sphi 0, %s167
      %s185 = sphi 0, %s185
      %s187 = sphi 0, %s185
      %s188 = sphi 0, %s187
      %s202 = sphi 0, %s188
      %s206 = sphi 0, %s206
      %s208 = sphi 0, %s206
      %s209 = sphi 0, %s208
      %s223 = sphi 0, %s209
      %s229 = sphi 0, %s231
      %s232 = sphi 0, %s229
      %s233 = sphi 0, %s232
      %s249 = sphi 0, %s233
      %s255 = sphi 0, %s257
      %s258 = sphi 0, %s255
      %s259 = sphi 0, %s258
      %s275 = sphi 0, %s259
    $region4: #{tpu_custom_call.1} parent=1 // loop_header_branch
      %28 = sbr.rel (%p26) target = $region8
    $region5: #{tpu_custom_call.1} parent=1 // loop_body
      %s30 = ssub.s32 %s25, 1
      %s31 = ssub.s32 %s25, 2
      %s32 = sadd.s32 %s25, 1
      %s33 = ssub.s32 %s25, %s32
      %p34 = scmp.eq.s32.totalorder %s33, 0
      %s36 = sadd.s32 %s35, 1
      %s37 = scalar_select %p34, %s35, %s36
      %p40 = pneg %p34
      %p41 = scmp.eq.s32.totalorder %s25, 2
      %p42 = por %p40, %p41
      %p43 = scmp.ne.s32.totalorder %s35, %s38
      %p44 = scmp.eq.s32.totalorder %s25, 0
      %p45 = por %p43, %p44
      %p46 = scmp.ne.s32.totalorder %s35, %s38
      %p47 = scmp.eq.s32.totalorder %s30, 2
      %p48 = por %p46, %p47
      %p49 = scmp.ne.s32.totalorder %s38, %s39
      %p50 = scmp.eq.s32.totalorder %s30, 0
      %p51 = por %p49, %p50
      %p52 = scmp.ne.s32.totalorder %s38, %s39
      %p53 = scmp.eq.s32.totalorder %s31, 2
      %p54 = por %p52, %p53
      %p56 = scmp.ne.s32.totalorder %s39, %s55
      %p57 = scmp.eq.s32.totalorder %s31, 0
      %p58 = por %p56, %p57
      %s60 = sadd.s32 %s59, 1
      %p63 = scmp.eq.s32.totalorder %s25, 2
      %p64 = scmp.ne.s32.totalorder %s59, %s61
      %p65 = scmp.eq.s32.totalorder %s25, 0
      %p66 = por %p64, %p65
      %p67 = scmp.ne.s32.totalorder %s59, %s61
      %p68 = scmp.eq.s32.totalorder %s30, 2
      %p69 = por %p67, %p68
      %p70 = scmp.ne.s32.totalorder %s61, %s62
      %p71 = scmp.eq.s32.totalorder %s30, 0
      %p72 = por %p70, %p71
      %p73 = scmp.ne.s32.totalorder %s61, %s62
      %p74 = scmp.eq.s32.totalorder %s31, 2
      %p75 = por %p73, %p74
      %p77 = scmp.ne.s32.totalorder %s62, %s76
      %p78 = scmp.eq.s32.totalorder %s31, 0
      %p79 = por %p77, %p78
      %s81 = sadd.s32 %s80, 1
      %p84 = scmp.eq.s32.totalorder %s25, 2
      %p85 = scmp.ne.s32.totalorder %s80, %s82
      %p86 = scmp.eq.s32.totalorder %s25, 0
      %p87 = por %p85, %p86
      %p88 = scmp.ne.s32.totalorder %s80, %s82
      %p89 = scmp.eq.s32.totalorder %s30, 2
      %p90 = por %p88, %p89
      %p91 = scmp.ne.s32.totalorder %s82, %s83
      %p92 = scmp.eq.s32.totalorder %s30, 0
      %p93 = por %p91, %p92
      %p94 = scmp.ne.s32.totalorder %s82, %s83
      %p95 = scmp.eq.s32.totalorder %s31, 2
      %p96 = por %p94, %p95
      %p98 = scmp.ne.s32.totalorder %s83, %s97
      %p99 = scmp.eq.s32.totalorder %s31, 0
      %p100 = por %p98, %p99
      %s102 = sadd.s32 %s101, 1
      %p105 = scmp.eq.s32.totalorder %s25, 2
      %p106 = scmp.ne.s32.totalorder %s101, %s103
      %p107 = scmp.eq.s32.totalorder %s25, 0
      %p108 = por %p106, %p107
      %p109 = scmp.ne.s32.totalorder %s101, %s103
      %p110 = scmp.eq.s32.totalorder %s30, 2
      %p111 = por %p109, %p110
      %p112 = scmp.ne.s32.totalorder %s103, %s104
      %p113 = scmp.eq.s32.totalorder %s30, 0
      %p114 = por %p112, %p113
      %p115 = scmp.ne.s32.totalorder %s103, %s104
      %p116 = scmp.eq.s32.totalorder %s31, 2
      %p117 = por %p115, %p116
      %p119 = scmp.ne.s32.totalorder %s104, %s118
      %p120 = scmp.eq.s32.totalorder %s31, 0
      %p121 = por %p119, %p120
      %s123 = sadd.s32 %s122, 1
      %p126 = scmp.eq.s32.totalorder %s25, 2
      %p127 = scmp.ne.s32.totalorder %s122, %s124
      %p128 = scmp.eq.s32.totalorder %s25, 0
      %p129 = por %p127, %p128
      %p130 = scmp.ne.s32.totalorder %s122, %s124
      %p131 = scmp.eq.s32.totalorder %s30, 2
      %p132 = por %p130, %p131
      %p133 = scmp.ne.s32.totalorder %s124, %s125
      %p134 = scmp.eq.s32.totalorder %s30, 0
      %p135 = por %p133, %p134
      %p136 = scmp.ne.s32.totalorder %s124, %s125
      %p137 = scmp.eq.s32.totalorder %s31, 2
      %p138 = por %p136, %p137
      %p140 = scmp.ne.s32.totalorder %s125, %s139
      %p141 = scmp.eq.s32.totalorder %s31, 0
      %p142 = por %p140, %p141
      %s144 = sadd.s32 %s143, 1
      %p147 = scmp.eq.s32.totalorder %s25, 2
      %p148 = scmp.ne.s32.totalorder %s143, %s145
      %p149 = scmp.eq.s32.totalorder %s25, 0
      %p150 = por %p148, %p149
      %p151 = scmp.ne.s32.totalorder %s143, %s145
      %p152 = scmp.eq.s32.totalorder %s30, 2
      %p153 = por %p151, %p152
      %p154 = scmp.ne.s32.totalorder %s145, %s146
      %p155 = scmp.eq.s32.totalorder %s30, 0
      %p156 = por %p154, %p155
      %p157 = scmp.ne.s32.totalorder %s145, %s146
      %p158 = scmp.eq.s32.totalorder %s31, 2
      %p159 = por %p157, %p158
      %p161 = scmp.ne.s32.totalorder %s146, %s160
      %p162 = scmp.eq.s32.totalorder %s31, 0
      %p163 = por %p161, %p162
      %s165 = sadd.s32 %s164, 1
      %p168 = scmp.eq.s32.totalorder %s25, 2
      %p169 = scmp.ne.s32.totalorder %s164, %s166
      %p170 = scmp.eq.s32.totalorder %s25, 0
      %p171 = por %p169, %p170
      %p172 = scmp.ne.s32.totalorder %s164, %s166
      %p173 = scmp.eq.s32.totalorder %s30, 2
      %p174 = por %p172, %p173
      %p175 = scmp.ne.s32.totalorder %s166, %s167
      %p176 = scmp.eq.s32.totalorder %s30, 0
      %p177 = por %p175, %p176
      %p178 = scmp.ne.s32.totalorder %s166, %s167
      %p179 = scmp.eq.s32.totalorder %s31, 2
      %p180 = por %p178, %p179
      %p182 = scmp.ne.s32.totalorder %s167, %s181
      %p183 = scmp.eq.s32.totalorder %s31, 0
      %p184 = por %p182, %p183
      %s186 = sadd.s32 %s185, 1
      %p189 = scmp.eq.s32.totalorder %s25, 2
      %p190 = scmp.ne.s32.totalorder %s185, %s187
      %p191 = scmp.eq.s32.totalorder %s25, 0
      %p192 = por %p190, %p191
      %p193 = scmp.ne.s32.totalorder %s185, %s187
      %p194 = scmp.eq.s32.totalorder %s30, 2
      %p195 = por %p193, %p194
      %p196 = scmp.ne.s32.totalorder %s187, %s188
      %p197 = scmp.eq.s32.totalorder %s30, 0
      %p198 = por %p196, %p197
      %p199 = scmp.ne.s32.totalorder %s187, %s188
      %p200 = scmp.eq.s32.totalorder %s31, 2
      %p201 = por %p199, %p200
      %p203 = scmp.ne.s32.totalorder %s188, %s202
      %p204 = scmp.eq.s32.totalorder %s31, 0
      %p205 = por %p203, %p204
      %s207 = sadd.s32 %s206, 1
      %p210 = scmp.eq.s32.totalorder %s25, 2
      %p211 = scmp.ne.s32.totalorder %s206, %s208
      %p212 = scmp.eq.s32.totalorder %s25, 0
      %p213 = por %p211, %p212
      %p214 = scmp.ne.s32.totalorder %s206, %s208
      %p215 = scmp.eq.s32.totalorder %s30, 2
      %p216 = por %p214, %p215
      %p217 = scmp.ne.s32.totalorder %s208, %s209
      %p218 = scmp.eq.s32.totalorder %s30, 0
      %p219 = por %p217, %p218
      %p220 = scmp.ne.s32.totalorder %s208, %s209
      %p221 = scmp.eq.s32.totalorder %s31, 2
      %p222 = por %p220, %p221
      %p224 = scmp.ne.s32.totalorder %s209, %s223
      %p225 = scmp.eq.s32.totalorder %s31, 0
      %p226 = por %p224, %p225
      %s227 = ssub.s32 %s25, %s32
      %p228 = scmp.eq.s32.totalorder %s227, 0
      %s230 = sadd.s32 %s229, 1
      %s231 = scalar_select %p228, %s229, %s230
      %p234 = pneg %p228
      %p235 = scmp.eq.s32.totalorder %s25, 2
      %p236 = por %p234, %p235
      %p237 = scmp.ne.s32.totalorder %s229, %s232
      %p238 = scmp.eq.s32.totalorder %s25, 0
      %p239 = por %p237, %p238
      %p240 = scmp.ne.s32.totalorder %s229, %s232
      %p241 = scmp.eq.s32.totalorder %s30, 2
      %p242 = por %p240, %p241
      %p243 = scmp.ne.s32.totalorder %s232, %s233
      %p244 = scmp.eq.s32.totalorder %s30, 0
      %p245 = por %p243, %p244
      %p246 = scmp.ne.s32.totalorder %s232, %s233
      %p247 = scmp.eq.s32.totalorder %s31, 2
      %p248 = por %p246, %p247
      %p250 = scmp.ne.s32.totalorder %s233, %s249
      %p251 = scmp.eq.s32.totalorder %s31, 0
      %p252 = por %p250, %p251
      %s253 = ssub.s32 %s25, %s32
      %p254 = scmp.eq.s32.totalorder %s253, 0
      %s256 = sadd.s32 %s255, 1
      %s257 = scalar_select %p254, %s255, %s256
      %p260 = pneg %p254
      %p261 = scmp.eq.s32.totalorder %s25, 2
      %p262 = por %p260, %p261
      %p263 = scmp.ne.s32.totalorder %s255, %s258
      %p264 = scmp.eq.s32.totalorder %s25, 0
      %p265 = por %p263, %p264
      %p266 = scmp.ne.s32.totalorder %s255, %s258
      %p267 = scmp.eq.s32.totalorder %s30, 2
      %p268 = por %p266, %p267
      %p269 = scmp.ne.s32.totalorder %s258, %s259
      %p270 = scmp.eq.s32.totalorder %s30, 0
      %p271 = por %p269, %p270
      %p272 = scmp.ne.s32.totalorder %s258, %s259
      %p273 = scmp.eq.s32.totalorder %s31, 2
      %p274 = por %p272, %p273
      %p276 = scmp.ne.s32.totalorder %s259, %s275
      %p277 = scmp.eq.s32.totalorder %s31, 0
      %p278 = por %p276, %p277
      %p279 = scmp.le.s32.totalorder 1, %s25
      %p280 = scmp.lt.s32.totalorder %s25, 4
      %p281 = pnand %p279, %p280
      %p282 = pneg %p281
      // Predicated region
      $region9: #{tpu_custom_call.1} parent=5 // pred_check
        _
      $region10: #{tpu_custom_call.1} parent=5 // pred_check_branch
        %284 = sbr.rel (%p281) target = $region12
      $region11: #{tpu_custom_call.1} parent=5 // pred_region
        %s285 = ssub.s32 %s25, 1
        // Predicated region
        $region13: #{tpu_custom_call.1} parent=11 // pred_check
          %p286 = pneg %p72
        $region14: #{tpu_custom_call.1} parent=11 // pred_check_branch
          %288 = sbr.rel (%p286) target = $region16
        $region15: #{tpu_custom_call.1} parent=11 // pred_region
          %s290 = ssub.s32 4096, 4096
          %291 = vsyncadd [#allocation3], %s290
          %s292 = sshll.u32 [#allocation2], 4
          %s293 = int_to_ptr.vmem [resolvable:$true] %s292
          %298 = dma.hbm_to_vmem [thread:$0]  %s1, 4096, %s293, [#allocation3], 128, 128, 8
        $region16: #{tpu_custom_call.1} parent=11 // pred_fallthru
          _
        // Predicated region
        $region17: #{tpu_custom_call.1} parent=11 // pred_check
          %p299 = pneg %p93
        $region18: #{tpu_custom_call.1} parent=11 // pred_check_branch
          %301 = sbr.rel (%p299) target = $region20
        $region19: #{tpu_custom_call.1} parent=11 // pred_region
          _
        $region20: #{tpu_custom_call.1} parent=11 // pred_fallthru
          _
        // Predicated region
        $region21: #{tpu_custom_call.1} parent=11 // pred_check
          %p302 = pneg %p114
        $region22: #{tpu_custom_call.1} parent=11 // pred_check_branch
          %304 = sbr.rel (%p302) target = $region24
        $region23: #{tpu_custom_call.1} parent=11 // pred_region
          _
        $region24: #{tpu_custom_call.1} parent=11 // pred_fallthru
          _
        // Predicated region
        $region25: #{tpu_custom_call.1} parent=11 // pred_check
          %p305 = pneg %p135
        $region26: #{tpu_custom_call.1} parent=11 // pred_check_branch
          %307 = sbr.rel (%p305) target = $region28
        $region27: #{tpu_custom_call.1} parent=11 // pred_region
          _
        $region28: #{tpu_custom_call.1} parent=11 // pred_fallthru
          _
        // Predicated region
        $region29: #{tpu_custom_call.1} parent=11 // pred_check
          %p308 = pneg %p156
        $region30: #{tpu_custom_call.1} parent=11 // pred_check_branch
          %310 = sbr.rel (%p308) target = $region32
        $region31: #{tpu_custom_call.1} parent=11 // pred_region
          _
        $region32: #{tpu_custom_call.1} parent=11 // pred_fallthru
          _
        // Predicated region
        $region33: #{tpu_custom_call.1} parent=11 // pred_check
          %p311 = pneg %p177
        $region34: #{tpu_custom_call.1} parent=11 // pred_check_branch
          %313 = sbr.rel (%p311) target = $region36
        $region35: #{tpu_custom_call.1} parent=11 // pred_region
          _
        $region36: #{tpu_custom_call.1} parent=11 // pred_fallthru
          _
        // Predicated region
        $region37: #{tpu_custom_call.1} parent=11 // pred_check
          %p314 = pneg %p198
        $region38: #{tpu_custom_call.1} parent=11 // pred_check_branch
          %316 = sbr.rel (%p314) target = $region40
        $region39: #{tpu_custom_call.1} parent=11 // pred_region
          %s318 = ssub.s32 4096, 4096
          %319 = vsyncadd [#allocation6], %s318
          %s320 = sshll.u32 [#allocation5], 4
          %s321 = int_to_ptr.vmem [resolvable:$true] %s320
          %326 = dma.hbm_to_vmem [thread:$0]  %s7, 4096, %s321, [#allocation6], 256, 256, 16
        $region40: #{tpu_custom_call.1} parent=11 // pred_fallthru
          _
        // Predicated region
        $region41: #{tpu_custom_call.1} parent=11 // pred_check
          %p327 = pneg %p219
        $region42: #{tpu_custom_call.1} parent=11 // pred_check_branch
          %329 = sbr.rel (%p327) target = $region44
        $region43: #{tpu_custom_call.1} parent=11 // pred_region
          _
        $region44: #{tpu_custom_call.1} parent=11 // pred_fallthru
          _
      $region12: #{tpu_custom_call.1} parent=5 // pred_fallthru
        _
      %p330 = scmp.lt.s32.totalorder %s25, 3
      // Predicated region
      $region45: #{tpu_custom_call.1} parent=5 // pred_check
        %p331 = pneg %p330
      $region46: #{tpu_custom_call.1} parent=5 // pred_check_branch
        %333 = sbr.rel (%p331) target = $region48
      $region47: #{tpu_custom_call.1} parent=5 // pred_region
        // Predicated region
        $region49: #{tpu_custom_call.1} parent=47 // pred_check
          %p334 = pneg %p45
        $region50: #{tpu_custom_call.1} parent=47 // pred_check_branch
          %336 = sbr.rel (%p334) target = $region52
        $region51: #{tpu_custom_call.1} parent=47 // pred_region
          %s337 = smul.u32 2, %s25
          %p338 = scmp.lt.s32.totalorder %s337, 5
          %s339 = scalar_select %p338, %s337, 5
          %s340 = smul.addr %s339, 2
          %s341 = smul.addr %s340, 8
          %s342 = scalar_lea.vmem %s0, %s341
          %s343 = smul.u32 2, %s25
        $region52: #{tpu_custom_call.1} parent=47 // pred_fallthru
          _
      $region48: #{tpu_custom_call.1} parent=5 // pred_fallthru
        _
      %p344 = scmp.le.s32.totalorder 1, %s25
      %p345 = scmp.lt.s32.totalorder %s25, 4
      %p346 = pnand %p344, %p345
      %p347 = pneg %p346
      // Predicated region
      $region53: #{tpu_custom_call.1} parent=5 // pred_check
        _
      $region54: #{tpu_custom_call.1} parent=5 // pred_check_branch
        %349 = sbr.rel (%p346) target = $region56
      $region55: #{tpu_custom_call.1} parent=5 // pred_region
        %s350 = ssub.s32 %s25, 1
        // Predicated region
        $region57: #{tpu_custom_call.1} parent=55 // pred_check
          %p351 = pneg %p72
        $region58: #{tpu_custom_call.1} parent=55 // pred_check_branch
          %353 = sbr.rel (%p351) target = $region60
        $region59: #{tpu_custom_call.1} parent=55 // pred_region
          %354 = dma.done [#allocation3], 4096
        $region60: #{tpu_custom_call.1} parent=55 // pred_fallthru
          _
        // Predicated region
        $region61: #{tpu_custom_call.1} parent=55 // pred_check
          %p355 = pneg %p198
        $region62: #{tpu_custom_call.1} parent=55 // pred_check_branch
          %357 = sbr.rel (%p355) target = $region64
        $region63: #{tpu_custom_call.1} parent=55 // pred_region
          %358 = dma.done [#allocation6], 4096
        $region64: #{tpu_custom_call.1} parent=55 // pred_fallthru
          _
        %s359 = smul.u32 2, %s30
        %p360 = scmp.lt.s32.totalorder %s359, 5
        %s361 = scalar_select %p360, %s359, 5
        %s362 = smul.addr %s361, 2
        %s363 = smul.addr %s362, 8
        %s364 = scalar_lea.vmem %s0, %s363
        %p365 = pneg %p51
        %p366 = pneg %p48
        %p367 = pneg %p72
        %p368 = pneg %p69
        %p369 = pneg %p93
        %p370 = pneg %p90
        %p371 = pneg %p114
        %p372 = pneg %p111
        %p373 = pneg %p135
        %p374 = pneg %p132
        %p375 = pneg %p156
        %p376 = pneg %p153
        %p377 = pneg %p177
        %p378 = pneg %p174
        %p379 = pneg %p198
        %p380 = pneg %p195
        %p381 = pneg %p219
        %p382 = pneg %p216
        %p383 = pneg %p245
        %p384 = pneg %p242
        %s385 = sand.u32 %s232, 1
        %s386 = scalar_lea.sflag [#allocation4], %s385
        %s387 = sand.u32 %s232, 1
        %s388 = smul.addr %s387, 16
        %s389 = scalar_lea.vmem [#allocation7], %s388
        %p390 = pneg %p271
        %p391 = pneg %p268
        %s392 = sand.u32 %s258, 1
        %s393 = scalar_lea.sflag [#allocation9], %s392
        %s394 = sand.u32 %s258, 1
        %s395 = smul.addr %s394, 32
        %s396 = scalar_lea.vmem [#allocation8], %s395
        %s397 = smul.u32 2, %s30
        %p398 = scmp.lt.s32.totalorder %s397, 5
        %s399 = scalar_select %p398, %s397, 5
        %s400 = smul.addr %s399, 2
        %s401 = smul.addr %s400, 8
        %s402 = scalar_lea.vmem %s0, %s401
        %s403 = smul.u32 2, %s30
        %s404 = smul.u32 2, %s30
        %s405 = smul.u32 2, %s30
        %v406 = vld [vmem:[%s402] sm:$0xff]
        %v407 = vld [vmem:[%s402 + $0x8] sm:$0xff]
        %v408 = vld [vmem:[%s402 + $0x10] sm:$0xff]
        %v409 = vld [vmem:[%s402 + $0x18] sm:$0xff]
        %v410 = vld [vmem:[#allocation2] sm:$0xff]
        %v411 = vld [vmem:[#allocation2 + $0x8] sm:$0xff]
        %v412 = vld [vmem:[#allocation2 + $0x10] sm:$0xff]
        %v413 = vld [vmem:[#allocation2 + $0x18] sm:$0xff]
        %v414 = vld [vmem:[#allocation2 + $0x20] sm:$0xff]
        %v415 = vld [vmem:[#allocation2 + $0x28] sm:$0xff]
        %v416 = vld [vmem:[#allocation2 + $0x30] sm:$0xff]
        %v417 = vld [vmem:[#allocation2 + $0x38] sm:$0xff]
        %v418 = vld [vmem:[#allocation2 + $0x40] sm:$0xff]
        %v419 = vld [vmem:[#allocation2 + $0x48] sm:$0xff]
        %v420 = vld [vmem:[#allocation2 + $0x50] sm:$0xff]
        %v421 = vld [vmem:[#allocation2 + $0x58] sm:$0xff]
        %v422 = vld [vmem:[#allocation2 + $0x60] sm:$0xff]
        %v423 = vld [vmem:[#allocation2 + $0x68] sm:$0xff]
        %v424 = vld [vmem:[#allocation2 + $0x70] sm:$0xff]
        %v425 = vld [vmem:[#allocation2 + $0x78] sm:$0xff]
        %v426 = vld [vmem:[#allocation2 + $0x80] sm:$0xff]
        %v427 = vld [vmem:[#allocation2 + $0x88] sm:$0xff]
        %v428 = vld [vmem:[#allocation2 + $0x90] sm:$0xff]
        %v429 = vld [vmem:[#allocation2 + $0x98] sm:$0xff]
        %v430 = vld [vmem:[#allocation2 + $0xa0] sm:$0xff]
        %v431 = vld [vmem:[#allocation2 + $0xa8] sm:$0xff]
        %v432 = vld [vmem:[#allocation2 + $0xb0] sm:$0xff]
        %v433 = vld [vmem:[#allocation2 + $0xb8] sm:$0xff]
        %v434 = vld [vmem:[#allocation2 + $0xc0] sm:$0xff]
        %v435 = vld [vmem:[#allocation2 + $0xc8] sm:$0xff]
        %v436 = vld [vmem:[#allocation2 + $0xd0] sm:$0xff]
        %v437 = vld [vmem:[#allocation2 + $0xd8] sm:$0xff]
        %v438 = vld [vmem:[#allocation2 + $0xe0] sm:$0xff]
        %v439 = vld [vmem:[#allocation2 + $0xe8] sm:$0xff]
        %v440 = vld [vmem:[#allocation2 + $0xf0] sm:$0xff]
        %v441 = vld [vmem:[#allocation2 + $0xf8] sm:$0xff]
        %v442 = vld [vmem:[%s2] sm:$0x1]
        %v444 = vlaneseq
        %v445 = vshrl.u32 %v444, 7
        %v446 = vsub.s32 0, %v445
        %v447 = vrot.slane %v442, %v446
        %449 = vmatprep.subr.mxu0 0.0
        %450 = vmatpush1.msra.mxu0 %v425
        %451 = vmatprep.subr.mxu0 0.0
        %452 = vmatpush1.msra.mxu0 %v424
        %453 = vmatprep.subr.mxu0 0.0
        %454 = vmatpush1.msra.mxu0 %v423
        %455 = vmatprep.subr.mxu0 0.0
        %456 = vmatpush1.msra.mxu0 %v422
        %457 = vmatprep.subr.mxu0 0.0
        %458 = vmatpush1.msra.mxu0 %v421
        %459 = vmatprep.subr.mxu0 0.0
        %460 = vmatpush1.msra.mxu0 %v420
        %461 = vmatprep.subr.mxu0 0.0
        %462 = vmatpush1.msra.mxu0 %v419
        %463 = vmatprep.subr.mxu0 0.0
        %464 = vmatpush1.msra.mxu0 %v418
        %465 = vmatprep.subr.mxu0 0.0
        %466 = vmatpush1.msra.mxu0 %v417
        %467 = vmatprep.subr.mxu0 0.0
        %468 = vmatpush1.msra.mxu0 %v416
        %469 = vmatprep.subr.mxu0 0.0
        %470 = vmatpush1.msra.mxu0 %v415
        %471 = vmatprep.subr.mxu0 0.0
        %472 = vmatpush1.msra.mxu0 %v414
        %473 = vmatprep.subr.mxu0 0.0
        %474 = vmatpush1.msra.mxu0 %v413
        %475 = vmatprep.subr.mxu0 0.0
        %476 = vmatpush1.msra.mxu0 %v412
        %477 = vmatprep.subr.mxu0 0.0
        %478 = vmatpush1.msra.mxu0 %v411
        %479 = vmatprep.subr.mxu0 0.0
        %480 = vmatpush1.msra.mxu0 %v410
        %481 = vmatprep.subr.mxu0 0.0
        %482 = vmatpush2.msra.mxu0 %v441
        %483 = vmatprep.subr.mxu0 0.0
        %484 = vmatpush2.msra.mxu0 %v440
        %485 = vmatprep.subr.mxu0 0.0
        %486 = vmatpush2.msra.mxu0 %v439
        %487 = vmatprep.subr.mxu0 0.0
        %488 = vmatpush2.msra.mxu0 %v438
        %489 = vmatprep.subr.mxu0 0.0
        %490 = vmatpush2.msra.mxu0 %v437
        %491 = vmatprep.subr.mxu0 0.0
        %492 = vmatpush2.msra.mxu0 %v436
        %493 = vmatprep.subr.mxu0 0.0
        %494 = vmatpush2.msra.mxu0 %v435
        %495 = vmatprep.subr.mxu0 0.0
        %496 = vmatpush2.msra.mxu0 %v434
        %497 = vmatprep.subr.mxu0 0.0
        %498 = vmatpush2.msra.mxu0 %v433
        %499 = vmatprep.subr.mxu0 0.0
        %500 = vmatpush2.msra.mxu0 %v432
        %501 = vmatprep.subr.mxu0 0.0
        %502 = vmatpush2.msra.mxu0 %v431
        %503 = vmatprep.subr.mxu0 0.0
        %504 = vmatpush2.msra.mxu0 %v430
        %505 = vmatprep.subr.mxu0 0.0
        %506 = vmatpush2.msra.mxu0 %v429
        %507 = vmatprep.subr.mxu0 0.0
        %508 = vmatpush2.msra.mxu0 %v428
        %509 = vmatprep.subr.mxu0 0.0
        %510 = vmatpush2.msra.mxu0 %v427
        %511 = vmatprep.subr.mxu0 0.0
        %512 = vmatpush2.msra.mxu0 %v426
        %513 = vmatprep.mubr.f32.mxu0 %v407
        %514 = vmatmul.mubr.f32.gmra.mxu0 %v406
        %v515 = vpop.f32.mrf.mxu0
        %v516 = vadd.f32 %v447, %v515
        %v517 = vpop.f32.mrf.mxu0
        %518 = vmatprep.mubr.f32.mxu0 %v409
        %519 = vmatmul.mubr.f32.gmra.mxu0 %v408
        %v520 = vpop.f32.mrf.mxu0
        %v521 = vadd.f32 %v447, %v520
        %v522 = vpop.f32.mrf.mxu0
        %523 = vdwg.mxu0
        %v524 = vmax.f32 %v516, 0.0
        %v525 = vmax.f32 %v521, 0.0
        %v526 = vld [vmem:[%s3] sm:$0xff]
        %v527 = vld [vmem:[%s3 + $0x8] sm:$0xff]
        %v528 = vld [vmem:[%s3 + $0x10] sm:$0xff]
        %v529 = vld [vmem:[%s3 + $0x18] sm:$0xff]
        %v530 = vld [vmem:[%s3 + $0x20] sm:$0xff]
        %v531 = vld [vmem:[%s3 + $0x28] sm:$0xff]
        %v532 = vld [vmem:[%s3 + $0x30] sm:$0xff]
        %v533 = vld [vmem:[%s3 + $0x38] sm:$0xff]
        %v534 = vld [vmem:[%s3 + $0x40] sm:$0xff]
        %v535 = vld [vmem:[%s3 + $0x48] sm:$0xff]
        %v536 = vld [vmem:[%s3 + $0x50] sm:$0xff]
        %v537 = vld [vmem:[%s3 + $0x58] sm:$0xff]
        %v538 = vld [vmem:[%s3 + $0x60] sm:$0xff]
        %v539 = vld [vmem:[%s3 + $0x68] sm:$0xff]
        %v540 = vld [vmem:[%s3 + $0x70] sm:$0xff]
        %v541 = vld [vmem:[%s3 + $0x78] sm:$0xff]
        %v542 = vld [vmem:[%s4] sm:$0x1]
        %v544 = vlaneseq
        %v545 = vshrl.u32 %v544, 7
        %v546 = vsub.s32 0, %v545
        %v547 = vrot.slane %v542, %v546
        %549 = vmatprep.subr.mxu0 0.0
        %550 = vmatpush1.msra.mxu0 %v541
        %551 = vmatprep.subr.mxu0 0.0
        %552 = vmatpush1.msra.mxu0 %v540
        %553 = vmatprep.subr.mxu0 0.0
        %554 = vmatpush1.msra.mxu0 %v539
        %555 = vmatprep.subr.mxu0 0.0
        %556 = vmatpush1.msra.mxu0 %v538
        %557 = vmatprep.subr.mxu0 0.0
        %558 = vmatpush1.msra.mxu0 %v537
        %559 = vmatprep.subr.mxu0 0.0
        %560 = vmatpush1.msra.mxu0 %v536
        %561 = vmatprep.subr.mxu0 0.0
        %562 = vmatpush1.msra.mxu0 %v535
        %563 = vmatprep.subr.mxu0 0.0
        %564 = vmatpush1.msra.mxu0 %v534
        %565 = vmatprep.subr.mxu0 0.0
        %566 = vmatpush1.msra.mxu0 %v533
        %567 = vmatprep.subr.mxu0 0.0
        %568 = vmatpush1.msra.mxu0 %v532
        %569 = vmatprep.subr.mxu0 0.0
        %570 = vmatpush1.msra.mxu0 %v531
        %571 = vmatprep.subr.mxu0 0.0
        %572 = vmatpush1.msra.mxu0 %v530
        %573 = vmatprep.subr.mxu0 0.0
        %574 = vmatpush1.msra.mxu0 %v529
        %575 = vmatprep.subr.mxu0 0.0
        %576 = vmatpush1.msra.mxu0 %v528
        %577 = vmatprep.subr.mxu0 0.0
        %578 = vmatpush1.msra.mxu0 %v527
        %579 = vmatprep.subr.mxu0 0.0
        %580 = vmatpush1.msra.mxu0 %v526
        %581 = vmatprep.subr.mxu0 0.0
        %582 = vmatpush2.msra.mxu0 0.0
        %583 = vmatprep.subr.mxu0 0.0
        %584 = vmatpush2.msra.mxu0 0.0
        %585 = vmatprep.subr.mxu0 0.0
        %586 = vmatpush2.msra.mxu0 0.0
        %587 = vmatprep.subr.mxu0 0.0
        %588 = vmatpush2.msra.mxu0 0.0
        %589 = vmatprep.subr.mxu0 0.0
        %590 = vmatpush2.msra.mxu0 0.0
        %591 = vmatprep.subr.mxu0 0.0
        %592 = vmatpush2.msra.mxu0 0.0
        %593 = vmatprep.subr.mxu0 0.0
        %594 = vmatpush2.msra.mxu0 0.0
        %595 = vmatprep.subr.mxu0 0.0
        %596 = vmatpush2.msra.mxu0 0.0
        %597 = vmatprep.subr.mxu0 0.0
        %598 = vmatpush2.msra.mxu0 0.0
        %599 = vmatprep.subr.mxu0 0.0
        %600 = vmatpush2.msra.mxu0 0.0
        %601 = vmatprep.subr.mxu0 0.0
        %602 = vmatpush2.msra.mxu0 0.0
        %603 = vmatprep.subr.mxu0 0.0
        %604 = vmatpush2.msra.mxu0 0.0
        %605 = vmatprep.subr.mxu0 0.0
        %606 = vmatpush2.msra.mxu0 0.0
        %607 = vmatprep.subr.mxu0 0.0
        %608 = vmatpush2.msra.mxu0 0.0
        %609 = vmatprep.subr.mxu0 0.0
        %610 = vmatpush2.msra.mxu0 0.0
        %611 = vmatprep.subr.mxu0 0.0
        %612 = vmatpush2.msra.mxu0 0.0
        %613 = vmatprep.mubr.f32.mxu0 0.0
        %614 = vmatmul.mubr.f32.gmra.mxu0 %v524
        %v615 = vpop.f32.mrf.mxu0
        %v616 = vadd.f32 %v547, %v615
        %v617 = vpop.f32.mrf.mxu0
        %618 = vmatprep.mubr.f32.mxu0 0.0
        %619 = vmatmul.mubr.f32.gmra.mxu0 %v525
        %v620 = vpop.f32.mrf.mxu0
        %v621 = vadd.f32 %v547, %v620
        %v622 = vpop.f32.mrf.mxu0
        %623 = vdwg.mxu0
        %v624 = vld [vmem:[%s5] sm:$0xff]
        %v625 = vld [vmem:[%s5 + $0x8] sm:$0xff]
        %v626 = vld [vmem:[%s5 + $0x10] sm:$0xff]
        %v627 = vld [vmem:[%s5 + $0x18] sm:$0xff]
        %v628 = vld [vmem:[%s5 + $0x20] sm:$0xff]
        %v629 = vld [vmem:[%s5 + $0x28] sm:$0xff]
        %v630 = vld [vmem:[%s5 + $0x30] sm:$0xff]
        %v631 = vld [vmem:[%s5 + $0x38] sm:$0xff]
        %v632 = vld [vmem:[%s6] sm:$0x1]
        %v634 = vlaneseq
        %v635 = vshrl.u32 %v634, 7
        %v636 = vsub.s32 0, %v635
        %v637 = vrot.slane %v632, %v636
        %vm639 = vcmask 523264
        %v641 = vsel %vm639, %v616, 0
        %v644 = vsel %vm639, %v621, 0
        %646 = vmatprep.subr.mxu0 0.0
        %647 = vmatpush1.msra.mxu0 0.0
        %648 = vmatprep.subr.mxu0 0.0
        %649 = vmatpush1.msra.mxu0 0.0
        %650 = vmatprep.subr.mxu0 0.0
        %651 = vmatpush1.msra.mxu0 0.0
        %652 = vmatprep.subr.mxu0 0.0
        %653 = vmatpush1.msra.mxu0 0.0
        %654 = vmatprep.subr.mxu0 0.0
        %655 = vmatpush1.msra.mxu0 0.0
        %656 = vmatprep.subr.mxu0 0.0
        %657 = vmatpush1.msra.mxu0 0.0
        %658 = vmatprep.subr.mxu0 0.0
        %659 = vmatpush1.msra.mxu0 0.0
        %660 = vmatprep.subr.mxu0 0.0
        %661 = vmatpush1.msra.mxu0 0.0
        %662 = vmatprep.subr.mxu0 0.0
        %663 = vmatpush1.msra.mxu0 %v631
        %664 = vmatprep.subr.mxu0 0.0
        %665 = vmatpush1.msra.mxu0 %v630
        %666 = vmatprep.subr.mxu0 0.0
        %667 = vmatpush1.msra.mxu0 %v629
        %668 = vmatprep.subr.mxu0 0.0
        %669 = vmatpush1.msra.mxu0 %v628
        %670 = vmatprep.subr.mxu0 0.0
        %671 = vmatpush1.msra.mxu0 %v627
        %672 = vmatprep.subr.mxu0 0.0
        %673 = vmatpush1.msra.mxu0 %v626
        %674 = vmatprep.subr.mxu0 0.0
        %675 = vmatpush1.msra.mxu0 %v625
        %676 = vmatprep.subr.mxu0 0.0
        %677 = vmatpush1.msra.mxu0 %v624
        %678 = vmatprep.subr.mxu0 0.0
        %679 = vmatpush2.msra.mxu0 0.0
        %680 = vmatprep.subr.mxu0 0.0
        %681 = vmatpush2.msra.mxu0 0.0
        %682 = vmatprep.subr.mxu0 0.0
        %683 = vmatpush2.msra.mxu0 0.0
        %684 = vmatprep.subr.mxu0 0.0
        %685 = vmatpush2.msra.mxu0 0.0
        %686 = vmatprep.subr.mxu0 0.0
        %687 = vmatpush2.msra.mxu0 0.0
        %688 = vmatprep.subr.mxu0 0.0
        %689 = vmatpush2.msra.mxu0 0.0
        %690 = vmatprep.subr.mxu0 0.0
        %691 = vmatpush2.msra.mxu0 0.0
        %692 = vmatprep.subr.mxu0 0.0
        %693 = vmatpush2.msra.mxu0 0.0
        %694 = vmatprep.subr.mxu0 0.0
        %695 = vmatpush2.msra.mxu0 0.0
        %696 = vmatprep.subr.mxu0 0.0
        %697 = vmatpush2.msra.mxu0 0.0
        %698 = vmatprep.subr.mxu0 0.0
        %699 = vmatpush2.msra.mxu0 0.0
        %700 = vmatprep.subr.mxu0 0.0
        %701 = vmatpush2.msra.mxu0 0.0
        %702 = vmatprep.subr.mxu0 0.0
        %703 = vmatpush2.msra.mxu0 0.0
        %704 = vmatprep.subr.mxu0 0.0
        %705 = vmatpush2.msra.mxu0 0.0
        %706 = vmatprep.subr.mxu0 0.0
        %707 = vmatpush2.msra.mxu0 0.0
        %708 = vmatprep.subr.mxu0 0.0
        %709 = vmatpush2.msra.mxu0 0.0
        %710 = vmatprep.mubr.f32.mxu0 0.0
        %711 = vmatmul.mubr.f32.gmra.mxu0 %v641
        %v712 = vpop.f32.mrf.mxu0
        %v713 = vadd.f32 %v637, %v712
        %v714 = vpop.f32.mrf.mxu0
        %715 = vmatprep.mubr.f32.mxu0 0.0
        %716 = vmatmul.mubr.f32.gmra.mxu0 %v644
        %v717 = vpop.f32.mrf.mxu0
        %v718 = vadd.f32 %v637, %v717
        %v719 = vpop.f32.mrf.mxu0
        %720 = vdwg.mxu0
        %v721 = vmax.f32 %v713, 0.0
        %v722 = vmax.f32 %v718, 0.0
        %v723 = vld [vmem:[#allocation5] sm:$0xff]
        %v724 = vld [vmem:[#allocation5 + $0x8] sm:$0xff]
        %v725 = vld [vmem:[#allocation5 + $0x10] sm:$0xff]
        %v726 = vld [vmem:[#allocation5 + $0x18] sm:$0xff]
        %v727 = vld [vmem:[#allocation5 + $0x20] sm:$0xff]
        %v728 = vld [vmem:[#allocation5 + $0x28] sm:$0xff]
        %v729 = vld [vmem:[#allocation5 + $0x30] sm:$0xff]
        %v730 = vld [vmem:[#allocation5 + $0x38] sm:$0xff]
        %v731 = vld [vmem:[#allocation5 + $0x40] sm:$0xff]
        %v732 = vld [vmem:[#allocation5 + $0x48] sm:$0xff]
        %v733 = vld [vmem:[#allocation5 + $0x50] sm:$0xff]
        %v734 = vld [vmem:[#allocation5 + $0x58] sm:$0xff]
        %v735 = vld [vmem:[#allocation5 + $0x60] sm:$0xff]
        %v736 = vld [vmem:[#allocation5 + $0x68] sm:$0xff]
        %v737 = vld [vmem:[#allocation5 + $0x70] sm:$0xff]
        %v738 = vld [vmem:[#allocation5 + $0x78] sm:$0xff]
        %v739 = vld [vmem:[#allocation5 + $0x80] sm:$0xff]
        %v740 = vld [vmem:[#allocation5 + $0x88] sm:$0xff]
        %v741 = vld [vmem:[#allocation5 + $0x90] sm:$0xff]
        %v742 = vld [vmem:[#allocation5 + $0x98] sm:$0xff]
        %v743 = vld [vmem:[#allocation5 + $0xa0] sm:$0xff]
        %v744 = vld [vmem:[#allocation5 + $0xa8] sm:$0xff]
        %v745 = vld [vmem:[#allocation5 + $0xb0] sm:$0xff]
        %v746 = vld [vmem:[#allocation5 + $0xb8] sm:$0xff]
        %v747 = vld [vmem:[#allocation5 + $0xc0] sm:$0xff]
        %v748 = vld [vmem:[#allocation5 + $0xc8] sm:$0xff]
        %v749 = vld [vmem:[#allocation5 + $0xd0] sm:$0xff]
        %v750 = vld [vmem:[#allocation5 + $0xd8] sm:$0xff]
        %v751 = vld [vmem:[#allocation5 + $0xe0] sm:$0xff]
        %v752 = vld [vmem:[#allocation5 + $0xe8] sm:$0xff]
        %v753 = vld [vmem:[#allocation5 + $0xf0] sm:$0xff]
        %v754 = vld [vmem:[#allocation5 + $0xf8] sm:$0xff]
        %v755 = vld [vmem:[%s8] sm:$0x3]
        %v757 = vlaneseq
        %v758 = vshrl.u32 %v757, 7
        %v759 = vsub.s32 0, %v758
        %v760 = vrot.slane %v755, %v759
        %v761 = vlaneseq
        %v762 = vshrl.u32 %v761, 7
        %v763 = vsub.s32 1, %v762
        %v764 = vrot.slane %v755, %v763
        %767 = vmatprep.subr.mxu0 %v754
        %768 = vmatpush1.msra.mxu0 %v753
        %769 = vmatprep.subr.mxu0 %v752
        %770 = vmatpush1.msra.mxu0 %v751
        %771 = vmatprep.subr.mxu0 %v750
        %772 = vmatpush1.msra.mxu0 %v749
        %773 = vmatprep.subr.mxu0 %v748
        %774 = vmatpush1.msra.mxu0 %v747
        %775 = vmatprep.subr.mxu0 %v746
        %776 = vmatpush1.msra.mxu0 %v745
        %777 = vmatprep.subr.mxu0 %v744
        %778 = vmatpush1.msra.mxu0 %v743
        %779 = vmatprep.subr.mxu0 %v742
        %780 = vmatpush1.msra.mxu0 %v741
        %781 = vmatprep.subr.mxu0 %v740
        %782 = vmatpush1.msra.mxu0 %v739
        %783 = vmatprep.subr.mxu0 %v738
        %784 = vmatpush1.msra.mxu0 %v737
        %785 = vmatprep.subr.mxu0 %v736
        %786 = vmatpush1.msra.mxu0 %v735
        %787 = vmatprep.subr.mxu0 %v734
        %788 = vmatpush1.msra.mxu0 %v733
        %789 = vmatprep.subr.mxu0 %v732
        %790 = vmatpush1.msra.mxu0 %v731
        %791 = vmatprep.subr.mxu0 %v730
        %792 = vmatpush1.msra.mxu0 %v729
        %793 = vmatprep.subr.mxu0 %v728
        %794 = vmatpush1.msra.mxu0 %v727
        %795 = vmatprep.subr.mxu0 %v726
        %796 = vmatpush1.msra.mxu0 %v725
        %797 = vmatprep.subr.mxu0 %v724
        %798 = vmatpush1.msra.mxu0 %v723
        %799 = vmatprep.subr.mxu0 0.0
        %800 = vmatpush2.msra.mxu0 0.0
        %801 = vmatprep.subr.mxu0 0.0
        %802 = vmatpush2.msra.mxu0 0.0
        %803 = vmatprep.subr.mxu0 0.0
        %804 = vmatpush2.msra.mxu0 0.0
        %805 = vmatprep.subr.mxu0 0.0
        %806 = vmatpush2.msra.mxu0 0.0
        %807 = vmatprep.subr.mxu0 0.0
        %808 = vmatpush2.msra.mxu0 0.0
        %809 = vmatprep.subr.mxu0 0.0
        %810 = vmatpush2.msra.mxu0 0.0
        %811 = vmatprep.subr.mxu0 0.0
        %812 = vmatpush2.msra.mxu0 0.0
        %813 = vmatprep.subr.mxu0 0.0
        %814 = vmatpush2.msra.mxu0 0.0
        %815 = vmatprep.subr.mxu0 0.0
        %816 = vmatpush2.msra.mxu0 0.0
        %817 = vmatprep.subr.mxu0 0.0
        %818 = vmatpush2.msra.mxu0 0.0
        %819 = vmatprep.subr.mxu0 0.0
        %820 = vmatpush2.msra.mxu0 0.0
        %821 = vmatprep.subr.mxu0 0.0
        %822 = vmatpush2.msra.mxu0 0.0
        %823 = vmatprep.subr.mxu0 0.0
        %824 = vmatpush2.msra.mxu0 0.0
        %825 = vmatprep.subr.mxu0 0.0
        %826 = vmatpush2.msra.mxu0 0.0
        %827 = vmatprep.subr.mxu0 0.0
        %828 = vmatpush2.msra.mxu0 0.0
        %829 = vmatprep.subr.mxu0 0.0
        %830 = vmatpush2.msra.mxu0 0.0
        %831 = vmatprep.mubr.f32.mxu0 0.0
        %832 = vmatmul.mubr.f32.gmra.mxu0 %v721
        %v833 = vpop.f32.mrf.mxu0
        %v834 = vadd.f32 %v760, %v833
        %v835 = vpop.f32.mrf.mxu0
        %v836 = vadd.f32 %v764, %v835
        %837 = vmatprep.mubr.f32.mxu0 0.0
        %838 = vmatmul.mubr.f32.gmra.mxu0 %v722
        %v839 = vpop.f32.mrf.mxu0
        %v840 = vadd.f32 %v760, %v839
        %v841 = vpop.f32.mrf.mxu0
        %v842 = vadd.f32 %v764, %v841
        %843 = vdwg.mxu0
        %844 = vst.msk [vmem:[%s389] sm:$0xff] %vm639, %v616
        %845 = vst.msk [vmem:[%s389 + $0x8] sm:$0xff] %vm639, %v621
        %846 = vst [vmem:[%s396] sm:$0xff] %v834
        %847 = vst [vmem:[%s396 + $0x8] sm:$0xff] %v836
        %848 = vst [vmem:[%s396 + $0x10] sm:$0xff] %v840
        %849 = vst [vmem:[%s396 + $0x18] sm:$0xff] %v842
        %s850 = sand.u32 %s232, 1
        %s851 = scalar_lea.sflag [#allocation4], %s850
        %s852 = sand.u32 %s232, 1
        %s853 = smul.addr %s852, 16
        %s854 = scalar_lea.vmem [#allocation7], %s853
        %s855 = sand.u32 %s258, 1
        %s856 = scalar_lea.sflag [#allocation9], %s855
        %s857 = sand.u32 %s258, 1
        %s858 = smul.addr %s857, 32
        %s859 = scalar_lea.vmem [#allocation8], %s858
        // Predicated region
        $region65: #{tpu_custom_call.1} parent=55 // pred_check
          %p860 = pneg %p242
        $region66: #{tpu_custom_call.1} parent=55 // pred_check_branch
          %862 = sbr.rel (%p860) target = $region68
        $region67: #{tpu_custom_call.1} parent=55 // pred_region
          %s863 = smul.u32 2, %s30
          %s865 = ssub.s32 256, 256
          %866 = vsyncadd %s851, %s865
          %s867 = smul.addr %s863, 128
          %s868 = scalar_lea.hbm %s9, %s867
          %s869 = sshll.u32 %s854, 4
          %s870 = int_to_ptr.vmem [resolvable:$true] %s869
          %875 = dma.vmem_to_hbm [thread:$0]  %s870, 256, %s868, %s851, 128, 128, 8
        $region68: #{tpu_custom_call.1} parent=55 // pred_fallthru
          _
        // Predicated region
        $region69: #{tpu_custom_call.1} parent=55 // pred_check
          %p876 = pneg %p268
        $region70: #{tpu_custom_call.1} parent=55 // pred_check_branch
          %878 = sbr.rel (%p876) target = $region72
        $region71: #{tpu_custom_call.1} parent=55 // pred_region
          %s879 = smul.u32 2, %s30
          %s881 = ssub.s32 512, 512
          %882 = vsyncadd %s856, %s881
          %s883 = smul.addr %s879, 2
          %s884 = smul.addr %s883, 128
          %s885 = scalar_lea.hbm %s10, %s884
          %s886 = sshll.u32 %s859, 4
          %s887 = int_to_ptr.vmem [resolvable:$true] %s886
          %892 = dma.vmem_to_hbm [thread:$0]  %s887, 512, %s885, %s856, 256, 256, 16
        $region72: #{tpu_custom_call.1} parent=55 // pred_fallthru
          _
      $region56: #{tpu_custom_call.1} parent=5 // pred_fallthru
        _
      %p893 = scmp.le.s32.totalorder 2, %s25
      // Predicated region
      $region73: #{tpu_custom_call.1} parent=5 // pred_check
        %p894 = pneg %p893
      $region74: #{tpu_custom_call.1} parent=5 // pred_check_branch
        %896 = sbr.rel (%p894) target = $region76
      $region75: #{tpu_custom_call.1} parent=5 // pred_region
        %s897 = ssub.s32 %s25, 2
        // Predicated region
        $region77: #{tpu_custom_call.1} parent=75 // pred_check
          %p898 = pneg %p248
        $region78: #{tpu_custom_call.1} parent=75 // pred_check_branch
          %900 = sbr.rel (%p898) target = $region80
        $region79: #{tpu_custom_call.1} parent=75 // pred_region
          %s901 = sand.u32 %s233, 1
          %s902 = scalar_lea.sflag [#allocation4], %s901
          %s903 = sand.u32 %s233, 1
          %s904 = smul.addr %s903, 16
          %s905 = scalar_lea.vmem [#allocation7], %s904
          %906 = dma.done %s902, 256
        $region80: #{tpu_custom_call.1} parent=75 // pred_fallthru
          _
        // Predicated region
        $region81: #{tpu_custom_call.1} parent=75 // pred_check
          %p907 = pneg %p274
        $region82: #{tpu_custom_call.1} parent=75 // pred_check_branch
          %909 = sbr.rel (%p907) target = $region84
        $region83: #{tpu_custom_call.1} parent=75 // pred_region
          %s910 = sand.u32 %s259, 1
          %s911 = scalar_lea.sflag [#allocation9], %s910
          %s912 = sand.u32 %s259, 1
          %s913 = smul.addr %s912, 32
          %s914 = scalar_lea.vmem [#allocation8], %s913
          %915 = dma.done %s911, 512
        $region84: #{tpu_custom_call.1} parent=75 // pred_fallthru
          _
      $region76: #{tpu_custom_call.1} parent=5 // pred_fallthru
        _
    $region6: #{tpu_custom_call.1} parent=1 // loop_footer
      %s29 = sadd.s32 1, %s25
    $region7: #{tpu_custom_call.1} parent=1 // loop_footer_branch
      %24 = sbr.rel target = $region3
    $region8: #{tpu_custom_call.1} parent=1 // loop_exit
      _
    %916 = vsyncpa [#allocation3], 1
    %s917 = scalar_lea.sflag [#allocation3], 1
    %918 = vsyncpa %s917, 1
    %919 = vsyncpa [#allocation6], 1
    %920 = vsyncpa [#allocation4], 1
    %s921 = scalar_lea.sflag [#allocation4], 1
    %922 = vsyncpa %s921, 1
    %923 = vsyncpa [#allocation9], 1
    %s924 = scalar_lea.sflag [#allocation9], 1
    %925 = vsyncpa %s924, 1

</llo_original>
